<compile_context>
chip_gen: v7x
topology: tpu7x:2x2x1
jax: 0.10.0
libtpu: 0.0.40
codegen_flags: <defaults>
</compile_context>

<pallas_src>
import jax
import jax.numpy as jnp
from jax.experimental import pallas as pl
from jax.experimental.pallas import tpu as pltpu


def se_kernel(x_ref, w1_ref, b1_ref, w2_ref, b2_ref, o_ref):
    # x_ref: (Nb, C, HW) tile -- HW on lanes (lane-dense), C on sublanes.
    x = x_ref[...]
    hw = x.shape[-1]

    # --- squeeze: global average pool over spatial (lane reduction, f32 acc) ---
    pooled = jnp.sum(x, axis=-1, dtype=jnp.float32) * jnp.float32(1.0 / hw)  # (Nb, C)

    # --- excitation: fc1 (1x1 conv) -> relu -> fc2 (1x1 conv) -> sigmoid ---
    h = jnp.dot(pooled, w1_ref[...], preferred_element_type=jnp.float32) + b1_ref[...]
    h = jnp.maximum(h, 0.0)                                                  # (Nb, C_red)
    s = jnp.dot(h, w2_ref[...], preferred_element_type=jnp.float32) + b2_ref[...]
    s = jax.nn.sigmoid(s)                                                    # (Nb, C)

    # --- scale: broadcast the per-(batch, channel) gate along the spatial lanes ---
    # Single fused multiply + lane-dense store; no intermediate VMEM tile copy.
    o_ref[...] = x * s.astype(x.dtype)[:, :, None]


def se_module(x_nchw, w1, b1, w2, b2, *, vmem_block_budget_bytes=40 * 1024 * 1024):
    """x_nchw: (N, C, H, W). w1: (C, C_red), b1: (1, C_red), w2: (C_red, C), b2: (1, C)."""
    N, C, H, W = x_nchw.shape
    HW = H * W
    C_red = w1.shape[1]

    # NCHW -> (N, C, HW) is a contiguous reshape: zero extra HBM traffic.
    xr = x_nchw.reshape(N, C, HW)

    # Batch elements per grid step: largest divisor of N such that the
    # double-buffered input + output blocks (4 copies of the block) stay within
    # a conservative budget (safe for v7x's 64 MiB VMEM, ample on v5e/v6e).
    per_batch_bytes = C * HW * xr.dtype.itemsize
    nb = min(N, max(1, vmem_block_budget_bytes // (4 * per_batch_bytes)))
    while N % nb != 0:
        nb -= 1
    # TODO(synk): for SE shapes where a single batch element exceeds the budget,
    # split HW with a two-pass (pool-accumulate then scale) grid structure.

    out = pl.pallas_call(
        se_kernel,
        out_shape=jax.ShapeDtypeStruct((N, C, HW), x_nchw.dtype),
        grid_spec=pltpu.PrefetchScalarGridSpec(
            num_scalar_prefetch=0,
            grid=(N // nb,),
            in_specs=[
                pl.BlockSpec((nb, C, HW), lambda n: (n, 0, 0)),  # x tile (Nb batches)
                pl.BlockSpec((C, C_red), lambda n: (0, 0)),      # fc1 weight (resident)
                pl.BlockSpec((1, C_red), lambda n: (0, 0)),      # fc1 bias
                pl.BlockSpec((C_red, C), lambda n: (0, 0)),      # fc2 weight (resident)
                pl.BlockSpec((1, C), lambda n: (0, 0)),          # fc2 bias
            ],
            out_specs=pl.BlockSpec((nb, C, HW), lambda n: (n, 0, 0)),
        ),
        compiler_params=pltpu.CompilerParams(
            dimension_semantics=("parallel",),        # shards batch over v7x's 2 TCs
            vmem_limit_bytes=64 * 1024 * 1024,        # lift the 16/32 MiB default scope
        ),
    )(xr, w1, b1, w2, b2)

    # (N, C, HW) -> NCHW: contiguous reshape, free.
    return out.reshape(N, C, H, W)


def se_reference(x_nchw, w1, b1, w2, b2):
    """Pure-JAX reference matching PyTorch SEModule.forward."""
    pooled = jnp.mean(x_nchw, axis=(2, 3))                       # (N, C)
    h = jnp.maximum(pooled @ w1 + b1, 0.0)                       # (N, C_red)
    s = jax.nn.sigmoid(h @ w2 + b2)                              # (N, C)
    return x_nchw * s[:, :, None, None]


if __name__ == "__main__":
    # Small shapes consistent with SEModule(chn=4, reduc=2) on a (2, 4, 16, 16) input.
    N, C, H, W = 2, 4, 16, 16
    reduc = 2
    C_red = C // reduc

    key = jax.random.PRNGKey(0)
    kx, k1, kb1, k2, kb2 = jax.random.split(key, 5)

    x = jax.random.normal(kx, (N, C, H, W), dtype=jnp.float32)
    # PyTorch fc1.weight has shape (C_red, C, 1, 1); we store its transpose
    # (C, C_red) so the kernel computes pooled @ w1 (same math).
    w1 = jax.random.normal(k1, (C, C_red), dtype=jnp.float32) * 0.5
    b1 = jax.random.normal(kb1, (1, C_red), dtype=jnp.float32) * 0.1
    w2 = jax.random.normal(k2, (C_red, C), dtype=jnp.float32) * 0.5
    b2 = jax.random.normal(kb2, (1, C), dtype=jnp.float32) * 0.1

    out = se_module(x, w1, b1, w2, b2)
    jax.block_until_ready(out)

    ref = se_reference(x, w1, b1, w2, b2)
    assert out.shape == (N, C, H, W)
    assert jnp.allclose(out, ref, atol=1e-5, rtol=1e-5), "Pallas kernel mismatch vs reference"

    print("KERNEL_OK")
</pallas_src>

<mosaic_0001>
module attributes {stable_mosaic.version = 11 : i64} {
  func.func @se_kernel(%arg0: i32, %arg1: memref<2x4x256xf32, #tpu.memory_space<vmem>>, %arg2: memref<4x2xf32, #tpu.memory_space<vmem>>, %arg3: memref<1x2xf32, #tpu.memory_space<vmem>>, %arg4: memref<2x4xf32, #tpu.memory_space<vmem>>, %arg5: memref<1x4xf32, #tpu.memory_space<vmem>>, %arg6: memref<2x4x256xf32, #tpu.memory_space<vmem>>) attributes {dimension_semantics = [#tpu.dimension_semantics<parallel>], iteration_bounds = array<i64: 1>, scalar_prefetch = 0 : i64, scratch_operands = 0 : i64, tpu.core_type = #tpu.core_type<tc>, window_params = [{transform_indices = @transform_0, window_bounds = array<i64: 2, 4, 256>}, {pipeline_mode = #tpu.pipeline_mode<synchronous>, transform_indices = @transform_1, window_bounds = array<i64: 4, 2>}, {pipeline_mode = #tpu.pipeline_mode<synchronous>, transform_indices = @transform_2, window_bounds = array<i64: 1, 2>}, {pipeline_mode = #tpu.pipeline_mode<synchronous>, transform_indices = @transform_3, window_bounds = array<i64: 2, 4>}, {pipeline_mode = #tpu.pipeline_mode<synchronous>, transform_indices = @transform_4, window_bounds = array<i64: 1, 4>}, {transform_indices = @transform_5, window_bounds = array<i64: 2, 4, 256>}]} {
    %c0 = arith.constant 0 : index
    %c0_0 = arith.constant 0 : index
    %c0_1 = arith.constant 0 : index
    %0 = vector.load %arg1[%c0, %c0_0, %c0_1] : memref<2x4x256xf32, #tpu.memory_space<vmem>>, vector<2x4x256xf32>
    %cst = arith.constant dense<0.000000e+00> : vector<2x4xf32>
    %1 = vector.multi_reduction <add>, %0, %cst [2] : vector<2x4x256xf32> to vector<2x4xf32>
    %cst_2 = arith.constant 3.906250e-03 : f32
    %2 = vector.broadcast %cst_2 : f32 to vector<2x4xf32>
    %3 = arith.mulf %1, %2 : vector<2x4xf32>
    %c0_3 = arith.constant 0 : index
    %c0_4 = arith.constant 0 : index
    %4 = vector.load %arg2[%c0_3, %c0_4] : memref<4x2xf32, #tpu.memory_space<vmem>>, vector<4x2xf32>
    %cst_5 = arith.constant dense<0.000000e+00> : vector<2x2xf32>
    %5 = tpu.matmul %3, %4, %cst_5 {dimension_numbers = #tpu.dot_dimension_numbers<[1], [0], [0], [1], [0, 0, 1, 1], [], []>} : vector<2x4xf32>, vector<4x2xf32>, vector<2x2xf32> -> vector<2x2xf32>
    %c0_6 = arith.constant 0 : index
    %c0_7 = arith.constant 0 : index
    %6 = vector.load %arg3[%c0_6, %c0_7] : memref<1x2xf32, #tpu.memory_space<vmem>>, vector<1x2xf32>
    %7 = vector.broadcast %6 : vector<1x2xf32> to vector<2x2xf32>
    %8 = arith.addf %5, %7 : vector<2x2xf32>
    %cst_8 = arith.constant 0.000000e+00 : f32
    %9 = vector.broadcast %cst_8 : f32 to vector<2x2xf32>
    %10 = arith.maximumf %8, %9 : vector<2x2xf32>
    %c0_9 = arith.constant 0 : index
    %c0_10 = arith.constant 0 : index
    %11 = vector.load %arg4[%c0_9, %c0_10] : memref<2x4xf32, #tpu.memory_space<vmem>>, vector<2x4xf32>
    %cst_11 = arith.constant dense<0.000000e+00> : vector<2x4xf32>
    %12 = tpu.matmul %10, %11, %cst_11 {dimension_numbers = #tpu.dot_dimension_numbers<[1], [0], [0], [1], [0, 0, 1, 1], [], []>} : vector<2x2xf32>, vector<2x4xf32>, vector<2x4xf32> -> vector<2x4xf32>
    %c0_12 = arith.constant 0 : index
    %c0_13 = arith.constant 0 : index
    %13 = vector.load %arg5[%c0_12, %c0_13] : memref<1x4xf32, #tpu.memory_space<vmem>>, vector<1x4xf32>
    %14 = vector.broadcast %13 : vector<1x4xf32> to vector<2x4xf32>
    %15 = arith.addf %12, %14 : vector<2x4xf32>
    %16 = arith.negf %15 : vector<2x4xf32>
    %17 = math.exp %16 : vector<2x4xf32>
    %cst_14 = arith.constant 1.000000e+00 : f32
    %18 = vector.broadcast %cst_14 : f32 to vector<2x4xf32>
    %19 = arith.addf %18, %17 : vector<2x4xf32>
    %20 = arith.divf %18, %19 : vector<2x4xf32>
    %21 = vector.shape_cast %20 : vector<2x4xf32> to vector<2x4x1xf32>
    %22 = vector.broadcast %21 : vector<2x4x1xf32> to vector<2x4x256xf32>
    %23 = arith.mulf %0, %22 : vector<2x4x256xf32>
    %c0_15 = arith.constant 0 : index
    %c0_16 = arith.constant 0 : index
    %c0_17 = arith.constant 0 : index
    %24 = vector.load %arg6[%c0_15, %c0_16, %c0_17] : memref<2x4x256xf32, #tpu.memory_space<vmem>>, vector<2x4x256xf32>
    tpu.vector_store %arg6[%c0_15, %c0_16, %c0_17], %23 {strides = array<i32>} : memref<2x4x256xf32, #tpu.memory_space<vmem>>, vector<2x4x256xf32>,
    return
  }
  func.func @transform_0(%arg0: i32) -> (i32, i32, i32) {
    %c0_i32 = arith.constant 0 : i32
    %c0_i32_0 = arith.constant 0 : i32
    %c0_i32_1 = arith.constant 0 : i32
    return %arg0, %c0_i32, %c0_i32_0 : i32, i32, i32
  }
  func.func @transform_1(%arg0: i32) -> (i32, i32) {
    %c0_i32 = arith.constant 0 : i32
    %c0_i32_0 = arith.constant 0 : i32
    %c0_i32_1 = arith.constant 0 : i32
    return %c0_i32, %c0_i32_0 : i32, i32
  }
  func.func @transform_2(%arg0: i32) -> (i32, i32) {
    %c0_i32 = arith.constant 0 : i32
    %c0_i32_0 = arith.constant 0 : i32
    %c0_i32_1 = arith.constant 0 : i32
    return %c0_i32, %c0_i32_0 : i32, i32
  }
  func.func @transform_3(%arg0: i32) -> (i32, i32) {
    %c0_i32 = arith.constant 0 : i32
    %c0_i32_0 = arith.constant 0 : i32
    %c0_i32_1 = arith.constant 0 : i32
    return %c0_i32, %c0_i32_0 : i32, i32
  }
  func.func @transform_4(%arg0: i32) -> (i32, i32) {
    %c0_i32 = arith.constant 0 : i32
    %c0_i32_0 = arith.constant 0 : i32
    %c0_i32_1 = arith.constant 0 : i32
    return %c0_i32, %c0_i32_0 : i32, i32
  }
  func.func @transform_5(%arg0: i32) -> (i32, i32, i32) {
    %c0_i32 = arith.constant 0 : i32
    %c0_i32_0 = arith.constant 0 : i32
    %c0_i32_1 = arith.constant 0 : i32
    return %arg0, %c0_i32, %c0_i32_0 : i32, i32, i32
  }
}

</mosaic_0001>

<llo_original>
// kernel: tpu_custom_call.1
$region0: #{tpu_custom_call.1}
  #allocation0 [shape = 'u32[]', space=smem, size = 0x4, offset = 0x4, fixed_abs, tag = 'smem constant byte address 0x4 - core index']
  #allocation1 [shape = 'u32[144,128]{1,0:T(1,128)}', space=vmem, size = 0x12000, scoped, tag = 'internal scratch']
  %s0 = inlined_call_operand.hbm [shape: f32[2,4,256], index: 0, kind: input, shape index: {}]
  %s1 = inlined_call_operand.hbm [shape: f32[4,2], index: 1, kind: input, shape index: {}]
  %s2 = inlined_call_operand.hbm [shape: f32[1,2], index: 2, kind: input, shape index: {}]
  %s3 = inlined_call_operand.hbm [shape: f32[2,4], index: 3, kind: input, shape index: {}]
  %s4 = inlined_call_operand.hbm [shape: f32[1,4], index: 4, kind: input, shape index: {}]
  %s5 = inlined_call_operand.hbm [shape: f32[2,4,256], index: 5, kind: output, shape index: {}]
  %s6 = sld [smem:[#allocation0]]
  $region50: #{tpu_custom_call.1} parent=0
    _
  %s8 = ssub.s32 1, %s6
  %s9 = scalar_select 0, %s8, %s6
  $region1: #{tpu_custom_call.1} parent=0
    #allocation2 [shape = 'u8[8192]{0}', space=vmem, size = 0x2000, scoped, tag = 'input window, operand 0, single buffered']
    #allocation3 [shape = 's32[1]{0}', space=sflag, size = 0x4, scoped, tag = 'scoped memory for tpu_custom_call.1']
    #allocation4 [shape = 's32[1]{0}', space=sflag, size = 0x4, scoped, tag = 'scoped memory for tpu_custom_call.1']
    #allocation5 [shape = 'u8[2048]{0}', space=vmem, size = 0x800, scoped, tag = 'input window, operand 1, single buffered']
    #allocation6 [shape = 's32[1]{0}', space=sflag, size = 0x4, scoped, tag = 'scoped memory for tpu_custom_call.1']
    #allocation7 [shape = 'u8[512]{0}', space=vmem, size = 0x400, scoped, tag = 'input window, operand 2, single buffered']
    #allocation8 [shape = 'u8[1024]{0}', space=vmem, size = 0x400, scoped, tag = 'input window, operand 3, single buffered']
    #allocation9 [shape = 's32[1]{0}', space=sflag, size = 0x4, scoped, tag = 'scoped memory for tpu_custom_call.1']
    #allocation10 [shape = 'u8[512]{0}', space=vmem, size = 0x400, scoped, tag = 'input window, operand 4, single buffered']
    #allocation11 [shape = 'u8[8192]{0}', space=vmem, size = 0x2000, scoped, tag = 'output window, operand 0, single buffered']
    %10 = vsyncpa [#allocation3], 0
    %11 = vsyncpa [#allocation6], 0
    %12 = vsyncpa [#allocation9], 0
    %13 = vsyncpa [#allocation4], 0
    // Predicated region
    $region2: #{tpu_custom_call.1} parent=1 // pred_check
      _
    $region3: #{tpu_custom_call.1} parent=1 // pred_check_branch
      %15 = sbr.rel (0) target = $region5
    $region4: #{tpu_custom_call.1} parent=1 // pred_region
      %s17 = ssub.s32 256, 256
      %18 = vsyncadd [#allocation3], %s17
      %s19 = sshll.u32 [#allocation2], 4
      %s20 = int_to_ptr.vmem [resolvable:$true] %s19
      %25 = dma.hbm_to_vmem [thread:$0]  %s0, 256, %s20, [#allocation3], 128, 128, 8
    $region5: #{tpu_custom_call.1} parent=1 // pred_fallthru
      _
    // Predicated region
    $region6: #{tpu_custom_call.1} parent=1 // pred_check
      _
    $region7: #{tpu_custom_call.1} parent=1 // pred_check_branch
      %27 = sbr.rel (0) target = $region9
    $region8: #{tpu_custom_call.1} parent=1 // pred_region
      %s29 = ssub.s32 64, 64
      %30 = vsyncadd [#allocation6], %s29
      %s32 = sshll.u32 [#allocation5], 4
      %s33 = int_to_ptr.vmem [resolvable:$true] %s32
      %35 = dma.hbm_to_vmem [thread:$0]  %s1, 64, %s33, [#allocation6]
    $region9: #{tpu_custom_call.1} parent=1 // pred_fallthru
      _
    // Predicated region
    $region10: #{tpu_custom_call.1} parent=1 // pred_check
      _
    $region11: #{tpu_custom_call.1} parent=1 // pred_check_branch
      %37 = sbr.rel (0) target = $region13
    $region12: #{tpu_custom_call.1} parent=1 // pred_region
      %s39 = ssub.s32 16, 16
      %40 = vsyncadd [#allocation6], %s39
      %s42 = sshll.u32 [#allocation7], 4
      %s43 = int_to_ptr.vmem [resolvable:$true] %s42
      %45 = dma.hbm_to_vmem [thread:$0]  %s2, 16, %s43, [#allocation6]
    $region13: #{tpu_custom_call.1} parent=1 // pred_fallthru
      _
    // Predicated region
    $region14: #{tpu_custom_call.1} parent=1 // pred_check
      _
    $region15: #{tpu_custom_call.1} parent=1 // pred_check_branch
      %47 = sbr.rel (0) target = $region17
    $region16: #{tpu_custom_call.1} parent=1 // pred_region
      %s49 = ssub.s32 32, 32
      %50 = vsyncadd [#allocation9], %s49
      %s52 = sshll.u32 [#allocation8], 4
      %s53 = int_to_ptr.vmem [resolvable:$true] %s52
      %55 = dma.hbm_to_vmem [thread:$0]  %s3, 32, %s53, [#allocation9]
    $region17: #{tpu_custom_call.1} parent=1 // pred_fallthru
      _
    // Predicated region
    $region18: #{tpu_custom_call.1} parent=1 // pred_check
      _
    $region19: #{tpu_custom_call.1} parent=1 // pred_check_branch
      %57 = sbr.rel (0) target = $region21
    $region20: #{tpu_custom_call.1} parent=1 // pred_region
      %s59 = ssub.s32 16, 16
      %60 = vsyncadd [#allocation9], %s59
      %s62 = sshll.u32 [#allocation10], 4
      %s63 = int_to_ptr.vmem [resolvable:$true] %s62
      %65 = dma.hbm_to_vmem [thread:$0]  %s4, 16, %s63, [#allocation9]
    $region21: #{tpu_custom_call.1} parent=1 // pred_fallthru
      _
    // Predicated region
    $region22: #{tpu_custom_call.1} parent=1 // pred_check
      _
    $region23: #{tpu_custom_call.1} parent=1 // pred_check_branch
      %67 = sbr.rel (0) target = $region25
    $region24: #{tpu_custom_call.1} parent=1 // pred_region
      %68 = dma.done [#allocation3], 256
    $region25: #{tpu_custom_call.1} parent=1 // pred_fallthru
      _
    // Predicated region
    $region26: #{tpu_custom_call.1} parent=1 // pred_check
      _
    $region27: #{tpu_custom_call.1} parent=1 // pred_check_branch
      %70 = sbr.rel (0) target = $region29
    $region28: #{tpu_custom_call.1} parent=1 // pred_region
      %71 = dma.done [#allocation6], 64
    $region29: #{tpu_custom_call.1} parent=1 // pred_fallthru
      _
    // Predicated region
    $region30: #{tpu_custom_call.1} parent=1 // pred_check
      _
    $region31: #{tpu_custom_call.1} parent=1 // pred_check_branch
      %73 = sbr.rel (0) target = $region33
    $region32: #{tpu_custom_call.1} parent=1 // pred_region
      %74 = dma.done [#allocation6], 16
    $region33: #{tpu_custom_call.1} parent=1 // pred_fallthru
      _
    // Predicated region
    $region34: #{tpu_custom_call.1} parent=1 // pred_check
      _
    $region35: #{tpu_custom_call.1} parent=1 // pred_check_branch
      %76 = sbr.rel (0) target = $region37
    $region36: #{tpu_custom_call.1} parent=1 // pred_region
      %77 = dma.done [#allocation9], 32
    $region37: #{tpu_custom_call.1} parent=1 // pred_fallthru
      _
    // Predicated region
    $region38: #{tpu_custom_call.1} parent=1 // pred_check
      _
    $region39: #{tpu_custom_call.1} parent=1 // pred_check_branch
      %79 = sbr.rel (0) target = $region41
    $region40: #{tpu_custom_call.1} parent=1 // pred_region
      %80 = dma.done [#allocation9], 16
    $region41: #{tpu_custom_call.1} parent=1 // pred_fallthru
      _
    %v81 = vld [vmem:[#allocation2] sm:$0xff]
    %v82 = vld [vmem:[#allocation2 + $0x8] sm:$0xff]
    %v85 = vcombine.high %v81, %v81
    %v86 = vcombine.high %v82, %v82
    %vm89 = vcmask 1043456
    %v90 = vsel %vm89, %v81, 0.0
    %v91 = vsel %vm89, %v85, 0.0
    %v92 = vadd.f32 %v90, %v91
    %93 = vadd.xlane.f32.xlu0 %v92
    %v94 = vpop.xlane.xlu0 %93
    %v95 = vsel %vm89, %v82, 0.0
    %v96 = vsel %vm89, %v86, 0.0
    %v97 = vadd.f32 %v95, %v96
    %98 = vadd.xlane.f32.xlu0 %v97
    %v99 = vpop.xlane.xlu0 %98
    %v100 = vmul.f32 %v94, 0.00390625
    %v101 = vmul.f32 %v99, 0.00390625
    %v102 = vld [vmem:[#allocation5] sm:$0xf]
    %v103 = vld [vmem:[#allocation7] sm:$0x1]
    %v105 = vlaneseq
    %v106 = vshrl.u32 %v105, 7
    %v107 = vsub.s32 0, %v106
    %v108 = vrot.slane %v103, %v107
    %v112 = vlaneseq
    %v113 = vand.u32 %v112, 127
    %v114 = vlaneseq
    %v115 = vshrl.u32 %v114, 7
    %v116 = vsub.s32 %v113, %v115
    %v117 = vrot.slane %v100, %v116
    %v118 = vlaneseq
    %v119 = vshrl.u32 %v118, 7
    %v120 = vsub.s32 %v113, %v119
    %v121 = vrot.slane %v101, %v120
    %vm122 = vcmask 1041409
    %v123 = vsel %vm122, %v121, %v117
    %vm124 = vcmask 31744
    %v125 = vsel %vm124, %v123, 0
    %v128 = vsel %vm89, %v102, 0
    %130 = vmatprep.subr.mxu0 0.0
    %131 = vmatpush1.msra.mxu0 %v128
    %132 = vmatprep.subr.mxu0 0.0
    %133 = vmatpush1.msra.mxu0 0.0
    %134 = vmatprep.subr.mxu0 0.0
    %135 = vmatpush1.msra.mxu0 0.0
    %136 = vmatprep.subr.mxu0 0.0
    %137 = vmatpush1.msra.mxu0 0.0
    %138 = vmatprep.subr.mxu0 0.0
    %139 = vmatpush1.msra.mxu0 0.0
    %140 = vmatprep.subr.mxu0 0.0
    %141 = vmatpush1.msra.mxu0 0.0
    %142 = vmatprep.subr.mxu0 0.0
    %143 = vmatpush1.msra.mxu0 0.0
    %144 = vmatprep.subr.mxu0 0.0
    %145 = vmatpush1.msra.mxu0 0.0
    %146 = vmatprep.subr.mxu0 0.0
    %147 = vmatpush1.msra.mxu0 0.0
    %148 = vmatprep.subr.mxu0 0.0
    %149 = vmatpush1.msra.mxu0 0.0
    %150 = vmatprep.subr.mxu0 0.0
    %151 = vmatpush1.msra.mxu0 0.0
    %152 = vmatprep.subr.mxu0 0.0
    %153 = vmatpush1.msra.mxu0 0.0
    %154 = vmatprep.subr.mxu0 0.0
    %155 = vmatpush1.msra.mxu0 0.0
    %156 = vmatprep.subr.mxu0 0.0
    %157 = vmatpush1.msra.mxu0 0.0
    %158 = vmatprep.subr.mxu0 0.0
    %159 = vmatpush1.msra.mxu0 0.0
    %160 = vmatprep.subr.mxu0 0.0
    %161 = vmatpush1.msra.mxu0 0.0
    %162 = vmatprep.subr.mxu0 0.0
    %163 = vmatpush1.msra.mxu0 0.0
    %164 = vmatprep.subr.mxu0 0.0
    %165 = vmatpush1.msra.mxu0 0.0
    %166 = vmatprep.subr.mxu0 0.0
    %167 = vmatpush1.msra.mxu0 0.0
    %168 = vmatprep.subr.mxu0 0.0
    %169 = vmatpush1.msra.mxu0 0.0
    %170 = vmatprep.subr.mxu0 0.0
    %171 = vmatpush1.msra.mxu0 0.0
    %172 = vmatprep.subr.mxu0 0.0
    %173 = vmatpush1.msra.mxu0 0.0
    %174 = vmatprep.subr.mxu0 0.0
    %175 = vmatpush1.msra.mxu0 0.0
    %176 = vmatprep.subr.mxu0 0.0
    %177 = vmatpush1.msra.mxu0 0.0
    %178 = vmatprep.subr.mxu0 0.0
    %179 = vmatpush1.msra.mxu0 0.0
    %180 = vmatprep.subr.mxu0 0.0
    %181 = vmatpush1.msra.mxu0 0.0
    %182 = vmatprep.subr.mxu0 0.0
    %183 = vmatpush1.msra.mxu0 0.0
    %184 = vmatprep.subr.mxu0 0.0
    %185 = vmatpush1.msra.mxu0 0.0
    %186 = vmatprep.subr.mxu0 0.0
    %187 = vmatpush1.msra.mxu0 0.0
    %188 = vmatprep.subr.mxu0 0.0
    %189 = vmatpush1.msra.mxu0 0.0
    %190 = vmatprep.subr.mxu0 0.0
    %191 = vmatpush1.msra.mxu0 0.0
    %192 = vmatprep.subr.mxu0 0.0
    %193 = vmatpush1.msra.mxu0 0.0
    %194 = vmatprep.mubr.f32.mxu0 0.0
    %195 = vmatmul.mubr.f32.gmra.mrb[0].mxu0 %v125
    %v196 = vpop.f32.mrb[0].mxu0
    %v197 = vadd.f32 %v108, %v196
    %v198 = vpop.f32.mrb[0].mxu0
    %199 = vdwg.mxu0
    %v200 = vmax.f32 %v197, 0.0
    %v201 = vld [vmem:[#allocation8] sm:$0x3]
    %v202 = vld [vmem:[#allocation10] sm:$0x1]
    %v204 = vlaneseq
    %v205 = vshrl.u32 %v204, 7
    %v206 = vsub.s32 0, %v205
    %v207 = vrot.slane %v202, %v206
    %vm209 = vcmask 15360
    %v211 = vsel %vm209, %v200, 0
    %vm213 = vcmask 1041408
    %v215 = vsel %vm213, %v201, 0
    %217 = vmatprep.subr.mxu0 0.0
    %218 = vmatpush1.msra.mxu0 %v215
    %219 = vmatprep.subr.mxu0 0.0
    %220 = vmatpush1.msra.mxu0 0.0
    %221 = vmatprep.subr.mxu0 0.0
    %222 = vmatpush1.msra.mxu0 0.0
    %223 = vmatprep.subr.mxu0 0.0
    %224 = vmatpush1.msra.mxu0 0.0
    %225 = vmatprep.subr.mxu0 0.0
    %226 = vmatpush1.msra.mxu0 0.0
    %227 = vmatprep.subr.mxu0 0.0
    %228 = vmatpush1.msra.mxu0 0.0
    %229 = vmatprep.subr.mxu0 0.0
    %230 = vmatpush1.msra.mxu0 0.0
    %231 = vmatprep.subr.mxu0 0.0
    %232 = vmatpush1.msra.mxu0 0.0
    %233 = vmatprep.subr.mxu0 0.0
    %234 = vmatpush1.msra.mxu0 0.0
    %235 = vmatprep.subr.mxu0 0.0
    %236 = vmatpush1.msra.mxu0 0.0
    %237 = vmatprep.subr.mxu0 0.0
    %238 = vmatpush1.msra.mxu0 0.0
    %239 = vmatprep.subr.mxu0 0.0
    %240 = vmatpush1.msra.mxu0 0.0
    %241 = vmatprep.subr.mxu0 0.0
    %242 = vmatpush1.msra.mxu0 0.0
    %243 = vmatprep.subr.mxu0 0.0
    %244 = vmatpush1.msra.mxu0 0.0
    %245 = vmatprep.subr.mxu0 0.0
    %246 = vmatpush1.msra.mxu0 0.0
    %247 = vmatprep.subr.mxu0 0.0
    %248 = vmatpush1.msra.mxu0 0.0
    %249 = vmatprep.subr.mxu0 0.0
    %250 = vmatpush1.msra.mxu0 0.0
    %251 = vmatprep.subr.mxu0 0.0
    %252 = vmatpush1.msra.mxu0 0.0
    %253 = vmatprep.subr.mxu0 0.0
    %254 = vmatpush1.msra.mxu0 0.0
    %255 = vmatprep.subr.mxu0 0.0
    %256 = vmatpush1.msra.mxu0 0.0
    %257 = vmatprep.subr.mxu0 0.0
    %258 = vmatpush1.msra.mxu0 0.0
    %259 = vmatprep.subr.mxu0 0.0
    %260 = vmatpush1.msra.mxu0 0.0
    %261 = vmatprep.subr.mxu0 0.0
    %262 = vmatpush1.msra.mxu0 0.0
    %263 = vmatprep.subr.mxu0 0.0
    %264 = vmatpush1.msra.mxu0 0.0
    %265 = vmatprep.subr.mxu0 0.0
    %266 = vmatpush1.msra.mxu0 0.0
    %267 = vmatprep.subr.mxu0 0.0
    %268 = vmatpush1.msra.mxu0 0.0
    %269 = vmatprep.subr.mxu0 0.0
    %270 = vmatpush1.msra.mxu0 0.0
    %271 = vmatprep.subr.mxu0 0.0
    %272 = vmatpush1.msra.mxu0 0.0
    %273 = vmatprep.subr.mxu0 0.0
    %274 = vmatpush1.msra.mxu0 0.0
    %275 = vmatprep.subr.mxu0 0.0
    %276 = vmatpush1.msra.mxu0 0.0
    %277 = vmatprep.subr.mxu0 0.0
    %278 = vmatpush1.msra.mxu0 0.0
    %279 = vmatprep.subr.mxu0 0.0
    %280 = vmatpush1.msra.mxu0 0.0
    %281 = vmatprep.mubr.f32.mxu0 0.0
    %282 = vmatmul.mubr.f32.gmra.mrb[0].mxu0 %v211
    %v283 = vpop.f32.mrb[0].mxu0
    %v284 = vadd.f32 %v207, %v283
    %v285 = vpop.f32.mrb[0].mxu0
    %286 = vdwg.mxu0
    %v287 = vxor.u32 %v284, 2147483648
    %v288 = vmul.f32 %v287, 1.442695
    %v289 = vpow.pop %v288
    %v290 = vadd.f32 %v289, 1.0
    %v291 = vrcp.pop %v290
    %v292 = vmul.f32 1.0, %v291
    %v293 = vlaneseq
    %v294 = vshrl.u32 %v293, 7
    %v295 = vsub.s32 0, %v294
    %v296 = vrot.slane %v292, %v295
    %298 = vbcast.lane.b32.xlu0 %v296, 256
    %v299 = vpop.permute.xlu0 %298
    %v300 = vlaneseq
    %v301 = vshrl.u32 %v300, 7
    %v302 = vsub.s32 1, %v301
    %v303 = vrot.slane %v292, %v302
    %305 = vbcast.lane.b32.xlu0 %v303, 256
    %v306 = vpop.permute.xlu0 %305
    %v310 = vunpack.c.l.s4 839922192
    %v311 = vunpack.c.0.s8 %v310
    %v312 = vlaneseq
    %v313 = vshrl.u32 %v312, 7
    %v314 = vsub.s32 %v311, %v313
    %v315 = vrot.slane %v299, %v314
    %v317 = vunpack.c.l.s4 839922192
    %v318 = vunpack.c.0.s8 %v317
    %v319 = vlaneseq
    %v320 = vshrl.u32 %v319, 7
    %v321 = vsub.s32 %v318, %v320
    %v322 = vrot.slane %v306, %v321
    %v325 = vmul.f32 %v81, %v315
    %v326 = vmul.f32 %v82, %v322
    %327 = vst [vmem:[#allocation11] sm:$0xff] %v325
    %328 = vst [vmem:[#allocation11 + $0x8] sm:$0xff] %v326
    // Predicated region
    $region42: #{tpu_custom_call.1} parent=1 // pred_check
      _
    $region43: #{tpu_custom_call.1} parent=1 // pred_check_branch
      %330 = sbr.rel (0) target = $region45
    $region44: #{tpu_custom_call.1} parent=1 // pred_region
      %s332 = ssub.s32 256, 256
      %333 = vsyncadd [#allocation4], %s332
      %s334 = sshll.u32 [#allocation11], 4
      %s335 = int_to_ptr.vmem [resolvable:$true] %s334
      %340 = dma.vmem_to_hbm [thread:$0]  %s335, 256, %s5, [#allocation4], 128, 128, 8
    $region45: #{tpu_custom_call.1} parent=1 // pred_fallthru
      _
    // Predicated region
    $region46: #{tpu_custom_call.1} parent=1 // pred_check
      _
    $region47: #{tpu_custom_call.1} parent=1 // pred_check_branch
      %342 = sbr.rel (0) target = $region49
    $region48: #{tpu_custom_call.1} parent=1 // pred_region
      %343 = dma.done [#allocation4], 256
    $region49: #{tpu_custom_call.1} parent=1 // pred_fallthru
      _
    %344 = vsyncpa [#allocation3], 1
    %345 = vsyncpa [#allocation6], 1
    %346 = vsyncpa [#allocation9], 1
    %347 = vsyncpa [#allocation4], 1

</llo_original>
